<compile_context>
chip_gen: v7x
topology: tpu7x:2x2x1
jax: 0.10.0
libtpu: 0.0.40
codegen_flags: <defaults>
</compile_context>

<pallas_src>
import functools
import math

import jax
import jax.numpy as jnp
import numpy as np
from jax.experimental import pallas as pl
from jax.experimental.pallas import tpu as pltpu

F_IN = 116          # Linear(116, hidden)
F_PAD = 128         # padded feature dim (lane alignment)
HIDDEN = 32
H_PAD = 128         # padded hidden dim (lane-dense intermediates)
NUM_CLASSES = 2
BN_EPS = 1e-5


def _round_up(a, m):
    return ((a + m - 1) // m) * m


def _is_v7x():
    try:
        kind = jax.devices()[0].device_kind.lower()
    except Exception:
        return True                     # unknown -> conservative VMEM budget
    return ("v7" in kind) or ("7x" in kind)


# ---------------------------------------------------------------------------
# Fused kernel.
#   grid = (row tiles of A_hat ["parallel"], k tiles of A_hat ["arbitrary"])
#   per (i, k):      agg_acc += bf16(A_int8[i,k]) @ x[k]        (f32 acc)
#   on last k:       h = ReLU(BN(ReLU(ReLU(agg W1 + b1) W2 + b2)))
#                    partials[i] = P[:, i-tile] @ h     (un-normalised pool sum)
# The (ni, G, H) reduction, 1/count and Linear(hidden, 2) happen in the wrapper.
# ---------------------------------------------------------------------------
def gin_fused_kernel(a_ref, x_ref, p_ref, w1_ref, b1_ref, w2_ref, b2_ref,
                     bns_ref, bnt_ref, part_ref, agg_acc, *, x_slicing, tk):
    k = pl.program_id(1)
    nk = pl.num_programs(1)

    @pl.when(k == 0)
    def _init():
        agg_acc[...] = jnp.zeros_like(agg_acc)

    # A_hat tile arrives as int8 (small integer degree counts); upcast to bf16
    # after the DMA so the dominant HBM stream is 1 byte/element.
    a_blk = a_ref[...].astype(jnp.bfloat16)
    if x_slicing:
        # x is a single VMEM-resident block; slice the current k-chunk.
        row0 = pl.multiple_of(k * tk, 128)
        x_blk = x_ref[pl.ds(row0, tk), :]
    else:
        x_blk = x_ref[...]
    agg_acc[...] += jnp.dot(a_blk, x_blk, preferred_element_type=jnp.float32)

    @pl.when(k == nk - 1)
    def _epilogue():
        # MLP layer 1 (bf16 weights, f32 accumulation)
        h = jnp.dot(agg_acc[...].astype(jnp.bfloat16), w1_ref[...],
                    preferred_element_type=jnp.float32) + b1_ref[...]
        h = jnp.maximum(h, 0.0)
        # MLP layer 2
        h = jnp.dot(h.astype(jnp.bfloat16), w2_ref[...],
                    preferred_element_type=jnp.float32) + b2_ref[...]
        h = jnp.maximum(h, 0.0)
        # eval-mode BatchNorm1d folded to a single affine
        h = h * bns_ref[...] + bnt_ref[...]
        # F.relu after conv1 in GIN.forward
        h = jnp.maximum(h, 0.0)
        # per-row-tile partial of the (un-normalised) global_mean_pool sum
        part_ref[...] = jnp.dot(p_ref[...], h.astype(jnp.bfloat16),
                                preferred_element_type=jnp.float32)


@functools.partial(jax.jit, static_argnames=("num_graphs", "tile_override"))
def gin_forward(x, edge_index, batch, params, *, num_graphs, tile_override=None):
    """Mirrors GIN.forward (eval mode): returns (x_t, x_pooled)."""
    n = x.shape[0]
    f32 = jnp.float32
    bf16 = jnp.bfloat16
    is_v7x = _is_v7x()

    # ---- per-generation tile sizes & VMEM budget ----------------------------
    if tile_override is not None:
        tm, tk = tile_override
        n_pad = max(_round_up(n, math.lcm(tm, tk)), 128)
    elif n <= 4096:
        n_pad = max(_round_up(n, 128), 128)
        tk = n_pad                              # single reduction step
        tm = 128
        for cand in (512, 256):
            if n_pad % cand == 0:
                tm = cand
                break
    else:
        tk = 2048 if is_v7x else 4096           # A tile 1 / 2 MiB (int8)
        n_pad = _round_up(n, tk)                # tk is a multiple of 512
        tm = 512
    grid = (n_pad // tm, n_pad // tk)
    ni, nk = grid

    # keep x VMEM-resident unless it would blow the generation-specific budget
    x_bytes = n_pad * F_PAD * 2                 # bf16
    x_budget = (8 if is_v7x else 32) * 1024 * 1024
    x_resident = x_bytes <= x_budget
    x_slicing = x_resident and (n_pad > tk)
    vmem_limit = (32 if is_v7x else 96) * 1024 * 1024

    # ---- dense A_hat = A + I, built in bf16 then stored as int8 -------------
    # (counts exact in int8 up to 127 parallel edges per (dst, src) pair)
    # TODO(synk): for large sparse graphs replace this dense O(N^2) adjacency
    # with a CSR / scalar-prefetch gather formulation (PrefetchScalarGridSpec).
    src = edge_index[0]
    dst = edge_index[1]
    a_hat = jnp.zeros((n_pad, n_pad), bf16).at[dst, src].add(1.0)
    diag = jnp.arange(n)
    a_hat = a_hat.at[diag, diag].add(1.0)       # (1 + eps) * x_i with eps = 0
    a_hat = a_hat.astype(jnp.int8)

    x_pad = jnp.pad(x.astype(f32),
                    ((0, n_pad - n), (0, F_PAD - F_IN))).astype(bf16)

    # pooling membership matrix (1.0 entries, exact in bf16); 1/count is
    # applied in the wrapper after the partial-sum reduction.
    graph_ids = jnp.arange(num_graphs, dtype=batch.dtype)
    batch_pad = jnp.pad(batch, (0, n_pad - n), constant_values=-1)
    one_hot = (batch_pad[None, :] == graph_ids[:, None]).astype(f32)
    counts = jnp.maximum(one_hot.sum(axis=1, keepdims=True), 1.0)   # (G, 1)
    pool_mat = one_hot.astype(bf16)

    # ---- lane-dense (128-padded) weights; BN folded to scale/shift ----------
    w1 = jnp.pad(params["w1"], ((0, F_PAD - F_IN), (0, H_PAD - HIDDEN))).astype(bf16)
    b1 = jnp.pad(params["b1"], ((0, 0), (0, H_PAD - HIDDEN)))
    w2 = jnp.pad(params["w2"], ((0, H_PAD - HIDDEN), (0, H_PAD - HIDDEN))).astype(bf16)
    b2 = jnp.pad(params["b2"], ((0, 0), (0, H_PAD - HIDDEN)))
    bn_scale = params["bn_gamma"] * jax.lax.rsqrt(params["bn_var"] + BN_EPS)
    bn_shift = params["bn_beta"] - params["bn_mean"] * bn_scale
    bn_scale = jnp.pad(bn_scale, ((0, 0), (0, H_PAD - HIDDEN)))
    bn_shift = jnp.pad(bn_shift, ((0, 0), (0, H_PAD - HIDDEN)))

    def _const_spec(shape):
        nd = len(shape)
        return pl.BlockSpec(shape, lambda i, k, nd=nd: (0,) * nd)

    # Deeper buffering on the big-VMEM generations (v5e/v6e) hides the
    # per-row-tile epilogue stall behind the A_hat HBM stream.
    if (not is_v7x) and nk >= 3 and (tm * tk >= 512 * 2048):
        a_spec = pl.BlockSpec((tm, tk), lambda i, k: (i, k),
                              pipeline_mode=pl.Buffered(3))
    else:
        a_spec = pl.BlockSpec((tm, tk), lambda i, k: (i, k))

    if x_slicing:
        x_spec = pl.BlockSpec((n_pad, F_PAD), lambda i, k: (0, 0))   # resident
    else:
        x_spec = pl.BlockSpec((tk, F_PAD), lambda i, k: (k, 0))      # chunked

    in_specs = [
        a_spec,                                                 # A_hat tile (int8)
        x_spec,                                                 # x features
        pl.BlockSpec((num_graphs, tm), lambda i, k: (0, i)),    # pool membership
        _const_spec((F_PAD, H_PAD)),     # w1
        _const_spec((1, H_PAD)),         # b1
        _const_spec((H_PAD, H_PAD)),     # w2
        _const_spec((1, H_PAD)),         # b2
        _const_spec((1, H_PAD)),         # bn_scale
        _const_spec((1, H_PAD)),         # bn_shift
    ]
    # per-row-tile pooled partial sums -> row axis stays "parallel"
    out_specs = pl.BlockSpec((None, num_graphs, H_PAD), lambda i, k: (i, 0, 0))

    kernel = functools.partial(gin_fused_kernel, x_slicing=x_slicing, tk=tk)

    partials = pl.pallas_call(
        kernel,
        grid=grid,
        in_specs=in_specs,
        out_specs=out_specs,
        out_shape=jax.ShapeDtypeStruct((ni, num_graphs, H_PAD), f32),
        scratch_shapes=[pltpu.VMEM((tm, F_PAD), f32)],          # agg accumulator
        compiler_params=pltpu.CompilerParams(
            dimension_semantics=("parallel", "arbitrary"),
            vmem_limit_bytes=vmem_limit),
    )(a_hat, x_pad, pool_mat, w1, b1, w2, b2, bn_scale, bn_shift)

    # tiny (ni, G, H) reduction + mean normalisation + Linear(hidden, 2) in f32
    pooled = partials.sum(axis=0)[:, :HIDDEN] / counts
    # Dropout(0.5) is identity in eval mode.
    # TODO(synk): stochastic train-mode dropout not implemented.
    logits = pooled @ params["w3"] + params["b3"]
    return logits, pooled


def _gin_reference(x, edge_index, batch, params, num_graphs):
    """Pure-JAX f32 reference of GIN.forward (eval mode)."""
    n = x.shape[0]
    src, dst = edge_index[0], edge_index[1]
    a = jnp.zeros((n, n), jnp.float32).at[dst, src].add(1.0)
    a = a + jnp.eye(n, dtype=jnp.float32)
    agg = a @ x
    h = jnp.maximum(agg @ params["w1"] + params["b1"], 0.0)
    h = jnp.maximum(h @ params["w2"] + params["b2"], 0.0)
    scale = params["bn_gamma"] * jax.lax.rsqrt(params["bn_var"] + BN_EPS)
    shift = params["bn_beta"] - params["bn_mean"] * scale
    h = jnp.maximum(h * scale + shift, 0.0)
    one_hot = (batch[None, :] == jnp.arange(num_graphs)[:, None]).astype(jnp.float32)
    counts = jnp.maximum(one_hot.sum(axis=1, keepdims=True), 1.0)
    pooled = (one_hot @ h) / counts
    logits = pooled @ params["w3"] + params["b3"]
    return logits, pooled


def init_params(key):
    k1, k2, k3, k4, k5, k6 = jax.random.split(key, 6)
    f32 = jnp.float32
    return {
        "w1": (jax.random.normal(k1, (F_IN, HIDDEN), f32) * 0.1),
        "b1": (jax.random.normal(k2, (1, HIDDEN), f32) * 0.1),
        "w2": (jax.random.normal(k3, (HIDDEN, HIDDEN), f32) * 0.1),
        "b2": (jax.random.normal(k4, (1, HIDDEN), f32) * 0.1),
        "bn_gamma": jnp.ones((1, HIDDEN), f32),
        "bn_beta": jnp.zeros((1, HIDDEN), f32),
        "bn_mean": jnp.zeros((1, HIDDEN), f32),
        "bn_var": jnp.ones((1, HIDDEN), f32),
        "w3": (jax.random.normal(k5, (HIDDEN, NUM_CLASSES), f32) * 0.1),
        "b3": (jax.random.normal(k6, (1, NUM_CLASSES), f32) * 0.1),
    }


if __name__ == "__main__":
    key = jax.random.PRNGKey(0)
    k_p, k_data = jax.random.split(key)
    params = init_params(k_p)

    # (nodes, edges, graphs, tile_override) — the last case forces a 3x3 grid
    # to exercise multi-row-tile partials, multi-k accumulation and the
    # VMEM-resident x slicing path at small shapes.
    cases = [
        (16, 40, 2, None),
        (300, 900, 3, None),
        (300, 900, 3, (128, 128)),
    ]

    for n_nodes, n_edges, n_graphs, tile_override in cases:
        kx, ks, kd, k_data = jax.random.split(k_data, 4)
        x = jax.random.normal(kx, (n_nodes, F_IN), jnp.float32)
        src = jax.random.randint(ks, (n_edges,), 0, n_nodes, dtype=jnp.int32)
        dst = jax.random.randint(kd, (n_edges,), 0, n_nodes, dtype=jnp.int32)
        edge_index = jnp.stack([src, dst], axis=0)             # [2, E]
        batch = ((jnp.arange(n_nodes) * n_graphs) // n_nodes).astype(jnp.int32)

        logits, pooled = gin_forward(x, edge_index, batch, params,
                                     num_graphs=n_graphs,
                                     tile_override=tile_override)
        jax.block_until_ready((logits, pooled))
        assert logits.shape == (n_graphs, NUM_CLASSES)
        assert pooled.shape == (n_graphs, HIDDEN)

        ref_logits, ref_pooled = _gin_reference(x, edge_index, batch, params,
                                                n_graphs)
        np.testing.assert_allclose(np.asarray(pooled), np.asarray(ref_pooled),
                                   rtol=8e-2, atol=8e-2)
        np.testing.assert_allclose(np.asarray(logits), np.asarray(ref_logits),
                                   rtol=8e-2, atol=8e-2)

    print("KERNEL_OK")
</pallas_src>

<mosaic_0001>
module attributes {stable_mosaic.version = 11 : i64} {
  func.func @gin_fused_kernel(%arg0: i32, %arg1: i32, %arg2: memref<128x128xi8, #tpu.memory_space<vmem>>, %arg3: memref<128x128xbf16, #tpu.memory_space<vmem>>, %arg4: memref<2x128xbf16, #tpu.memory_space<vmem>>, %arg5: memref<128x128xbf16, #tpu.memory_space<vmem>>, %arg6: memref<1x128xf32, #tpu.memory_space<vmem>>, %arg7: memref<128x128xbf16, #tpu.memory_space<vmem>>, %arg8: memref<1x128xf32, #tpu.memory_space<vmem>>, %arg9: memref<1x128xf32, #tpu.memory_space<vmem>>, %arg10: memref<1x128xf32, #tpu.memory_space<vmem>>, %arg11: memref<1x2x128xf32, #tpu.memory_space<vmem>>, %arg12: memref<128x128xf32, #tpu.memory_space<vmem>>) attributes {dimension_semantics = [#tpu.dimension_semantics<parallel>, #tpu.dimension_semantics<arbitrary>], iteration_bounds = array<i64: 1, 1>, scalar_prefetch = 0 : i64, scratch_operands = 1 : i64, tpu.core_type = #tpu.core_type<tc>, window_params = [{transform_indices = @transform_0, window_bounds = array<i64: 128, 128>}, {transform_indices = @transform_1, window_bounds = array<i64: 128, 128>}, {transform_indices = @transform_2, window_bounds = array<i64: 2, 128>}, {pipeline_mode = #tpu.pipeline_mode<synchronous>, transform_indices = @transform_3, window_bounds = array<i64: 128, 128>}, {pipeline_mode = #tpu.pipeline_mode<synchronous>, transform_indices = @transform_4, window_bounds = array<i64: 1, 128>}, {pipeline_mode = #tpu.pipeline_mode<synchronous>, transform_indices = @transform_5, window_bounds = array<i64: 128, 128>}, {pipeline_mode = #tpu.pipeline_mode<synchronous>, transform_indices = @transform_6, window_bounds = array<i64: 1, 128>}, {pipeline_mode = #tpu.pipeline_mode<synchronous>, transform_indices = @transform_7, window_bounds = array<i64: 1, 128>}, {pipeline_mode = #tpu.pipeline_mode<synchronous>, transform_indices = @transform_8, window_bounds = array<i64: 1, 128>}, {transform_indices = @transform_9, window_bounds = array<i64: 1, 2, 128>}]} {
    %c0_i32 = arith.constant 0 : i32
    %0 = arith.cmpi eq, %arg1, %c0_i32 : i32
    %1 = arith.extui %0 : i1 to i32
    %c0_i32_0 = arith.constant 0 : i32
    %2 = arith.cmpi ne, %1, %c0_i32_0 : i32
    scf.if %2 {
      %cst_10 = arith.constant 0.000000e+00 : f32
      %13 = vector.broadcast %cst_10 : f32 to vector<128x128xf32>
      %c0_11 = arith.constant 0 : index
      %c0_12 = arith.constant 0 : index
      %14 = vector.load %arg12[%c0_11, %c0_12] : memref<128x128xf32, #tpu.memory_space<vmem>>, vector<128x128xf32>
      tpu.vector_store %arg12[%c0_11, %c0_12], %13 {strides = array<i32>} : memref<128x128xf32, #tpu.memory_space<vmem>>, vector<128x128xf32>,
    } else {
    }
    %c0 = arith.constant 0 : index
    %c0_1 = arith.constant 0 : index
    %3 = vector.load %arg2[%c0, %c0_1] : memref<128x128xi8, #tpu.memory_space<vmem>>, vector<128x128xi8>
    %4 = arith.sitofp %3 : vector<128x128xi8> to vector<128x128xbf16>
    %c0_2 = arith.constant 0 : index
    %c0_3 = arith.constant 0 : index
    %5 = vector.load %arg3[%c0_2, %c0_3] : memref<128x128xbf16, #tpu.memory_space<vmem>>, vector<128x128xbf16>
    %c0_4 = arith.constant 0 : index
    %c0_5 = arith.constant 0 : index
    %6 = vector.load %arg12[%c0_4, %c0_5] : memref<128x128xf32, #tpu.memory_space<vmem>>, vector<128x128xf32>
    %cst = arith.constant dense<0.000000e+00> : vector<128x128xf32>
    %7 = tpu.matmul %4, %5, %cst {dimension_numbers = #tpu.dot_dimension_numbers<[1], [0], [0], [1], [0, 0, 1, 1], [], []>} : vector<128x128xbf16>, vector<128x128xbf16>, vector<128x128xf32> -> vector<128x128xf32>
    %8 = arith.addf %6, %7 : vector<128x128xf32>
    %c0_6 = arith.constant 0 : index
    %c0_7 = arith.constant 0 : index
    %9 = vector.load %arg12[%c0_6, %c0_7] : memref<128x128xf32, #tpu.memory_space<vmem>>, vector<128x128xf32>
    tpu.vector_store %arg12[%c0_6, %c0_7], %8 {strides = array<i32>} : memref<128x128xf32, #tpu.memory_space<vmem>>, vector<128x128xf32>,
    %c0_i32_8 = arith.constant 0 : i32
    %10 = arith.cmpi eq, %arg1, %c0_i32_8 : i32
    %11 = arith.extui %10 : i1 to i32
    %c0_i32_9 = arith.constant 0 : i32
    %12 = arith.cmpi ne, %11, %c0_i32_9 : i32
    scf.if %12 {
      %c0_10 = arith.constant 0 : index
      %c0_11 = arith.constant 0 : index
      %13 = vector.load %arg12[%c0_10, %c0_11] : memref<128x128xf32, #tpu.memory_space<vmem>>, vector<128x128xf32>
      %14 = arith.truncf %13 : vector<128x128xf32> to vector<128x128xbf16>
      %c0_12 = arith.constant 0 : index
      %c0_13 = arith.constant 0 : index
      %15 = vector.load %arg5[%c0_12, %c0_13] : memref<128x128xbf16, #tpu.memory_space<vmem>>, vector<128x128xbf16>
      %cst_14 = arith.constant dense<0.000000e+00> : vector<128x128xf32>
      %16 = tpu.matmul %14, %15, %cst_14 {dimension_numbers = #tpu.dot_dimension_numbers<[1], [0], [0], [1], [0, 0, 1, 1], [], []>} : vector<128x128xbf16>, vector<128x128xbf16>, vector<128x128xf32> -> vector<128x128xf32>
      %c0_15 = arith.constant 0 : index
      %c0_16 = arith.constant 0 : index
      %17 = vector.load %arg6[%c0_15, %c0_16] : memref<1x128xf32, #tpu.memory_space<vmem>>, vector<1x128xf32>
      %18 = vector.broadcast %17 : vector<1x128xf32> to vector<128x128xf32>
      %19 = arith.addf %16, %18 : vector<128x128xf32>
      %cst_17 = arith.constant 0.000000e+00 : f32
      %20 = vector.broadcast %cst_17 : f32 to vector<128x128xf32>
      %21 = arith.maximumf %19, %20 : vector<128x128xf32>
      %22 = arith.truncf %21 : vector<128x128xf32> to vector<128x128xbf16>
      %c0_18 = arith.constant 0 : index
      %c0_19 = arith.constant 0 : index
      %23 = vector.load %arg7[%c0_18, %c0_19] : memref<128x128xbf16, #tpu.memory_space<vmem>>, vector<128x128xbf16>
      %cst_20 = arith.constant dense<0.000000e+00> : vector<128x128xf32>
      %24 = tpu.matmul %22, %23, %cst_20 {dimension_numbers = #tpu.dot_dimension_numbers<[1], [0], [0], [1], [0, 0, 1, 1], [], []>} : vector<128x128xbf16>, vector<128x128xbf16>, vector<128x128xf32> -> vector<128x128xf32>
      %c0_21 = arith.constant 0 : index
      %c0_22 = arith.constant 0 : index
      %25 = vector.load %arg8[%c0_21, %c0_22] : memref<1x128xf32, #tpu.memory_space<vmem>>, vector<1x128xf32>
      %26 = vector.broadcast %25 : vector<1x128xf32> to vector<128x128xf32>
      %27 = arith.addf %24, %26 : vector<128x128xf32>
      %cst_23 = arith.constant 0.000000e+00 : f32
      %28 = vector.broadcast %cst_23 : f32 to vector<128x128xf32>
      %29 = arith.maximumf %27, %28 : vector<128x128xf32>
      %c0_24 = arith.constant 0 : index
      %c0_25 = arith.constant 0 : index
      %30 = vector.load %arg9[%c0_24, %c0_25] : memref<1x128xf32, #tpu.memory_space<vmem>>, vector<1x128xf32>
      %31 = vector.broadcast %30 : vector<1x128xf32> to vector<128x128xf32>
      %32 = arith.mulf %29, %31 : vector<128x128xf32>
      %c0_26 = arith.constant 0 : index
      %c0_27 = arith.constant 0 : index
      %33 = vector.load %arg10[%c0_26, %c0_27] : memref<1x128xf32, #tpu.memory_space<vmem>>, vector<1x128xf32>
      %34 = vector.broadcast %33 : vector<1x128xf32> to vector<128x128xf32>
      %35 = arith.addf %32, %34 : vector<128x128xf32>
      %cst_28 = arith.constant 0.000000e+00 : f32
      %36 = vector.broadcast %cst_28 : f32 to vector<128x128xf32>
      %37 = arith.maximumf %35, %36 : vector<128x128xf32>
      %c0_29 = arith.constant 0 : index
      %c0_30 = arith.constant 0 : index
      %38 = vector.load %arg4[%c0_29, %c0_30] : memref<2x128xbf16, #tpu.memory_space<vmem>>, vector<2x128xbf16>
      %39 = arith.truncf %37 : vector<128x128xf32> to vector<128x128xbf16>
      %cst_31 = arith.constant dense<0.000000e+00> : vector<2x128xf32>
      %40 = tpu.matmul %38, %39, %cst_31 {dimension_numbers = #tpu.dot_dimension_numbers<[1], [0], [0], [1], [0, 0, 1, 1], [], []>} : vector<2x128xbf16>, vector<128x128xbf16>, vector<2x128xf32> -> vector<2x128xf32>
      %c0_32 = arith.constant 0 : index
      %c0_33 = arith.constant 0 : index
      %c0_34 = arith.constant 0 : index
      %41 = vector.load %arg11[%c0_32, %c0_33, %c0_34] : memref<1x2x128xf32, #tpu.memory_space<vmem>>, vector<1x2x128xf32>
      %42 = vector.shape_cast %41 : vector<1x2x128xf32> to vector<2x128xf32>
      %43 = vector.shape_cast %40 : vector<2x128xf32> to vector<1x2x128xf32>
      tpu.vector_store %arg11[%c0_32, %c0_33, %c0_34], %43 {strides = array<i32>} : memref<1x2x128xf32, #tpu.memory_space<vmem>>, vector<1x2x128xf32>,
    } else {
    }
    return
  }
  func.func @transform_0(%arg0: i32, %arg1: i32) -> (i32, i32) {
    %c0_i32 = arith.constant 0 : i32
    return %arg0, %arg1 : i32, i32
  }
  func.func @transform_1(%arg0: i32, %arg1: i32) -> (i32, i32) {
    %c0_i32 = arith.constant 0 : i32
    %c0_i32_0 = arith.constant 0 : i32
    return %arg1, %c0_i32 : i32, i32
  }
  func.func @transform_2(%arg0: i32, %arg1: i32) -> (i32, i32) {
    %c0_i32 = arith.constant 0 : i32
    %c0_i32_0 = arith.constant 0 : i32
    return %c0_i32, %arg0 : i32, i32
  }
  func.func @transform_3(%arg0: i32, %arg1: i32) -> (i32, i32) {
    %c0_i32 = arith.constant 0 : i32
    %c0_i32_0 = arith.constant 0 : i32
    %c0_i32_1 = arith.constant 0 : i32
    return %c0_i32, %c0_i32_0 : i32, i32
  }
  func.func @transform_4(%arg0: i32, %arg1: i32) -> (i32, i32) {
    %c0_i32 = arith.constant 0 : i32
    %c0_i32_0 = arith.constant 0 : i32
    %c0_i32_1 = arith.constant 0 : i32
    return %c0_i32, %c0_i32_0 : i32, i32
  }
  func.func @transform_5(%arg0: i32, %arg1: i32) -> (i32, i32) {
    %c0_i32 = arith.constant 0 : i32
    %c0_i32_0 = arith.constant 0 : i32
    %c0_i32_1 = arith.constant 0 : i32
    return %c0_i32, %c0_i32_0 : i32, i32
  }
  func.func @transform_6(%arg0: i32, %arg1: i32) -> (i32, i32) {
    %c0_i32 = arith.constant 0 : i32
    %c0_i32_0 = arith.constant 0 : i32
    %c0_i32_1 = arith.constant 0 : i32
    return %c0_i32, %c0_i32_0 : i32, i32
  }
  func.func @transform_7(%arg0: i32, %arg1: i32) -> (i32, i32) {
    %c0_i32 = arith.constant 0 : i32
    %c0_i32_0 = arith.constant 0 : i32
    %c0_i32_1 = arith.constant 0 : i32
    return %c0_i32, %c0_i32_0 : i32, i32
  }
  func.func @transform_8(%arg0: i32, %arg1: i32) -> (i32, i32) {
    %c0_i32 = arith.constant 0 : i32
    %c0_i32_0 = arith.constant 0 : i32
    %c0_i32_1 = arith.constant 0 : i32
    return %c0_i32, %c0_i32_0 : i32, i32
  }
  func.func @transform_9(%arg0: i32, %arg1: i32) -> (i32, i32, i32) {
    %c0_i32 = arith.constant 0 : i32
    %c0_i32_0 = arith.constant 0 : i32
    %c0_i32_1 = arith.constant 0 : i32
    return %arg0, %c0_i32, %c0_i32_0 : i32, i32, i32
  }
}

</mosaic_0001>

<llo_original>
// kernel: gin_forward.1
$region0: #{gin_forward.1}
  #allocation0 [shape = 'u32[]', space=smem, size = 0x4, offset = 0x4, fixed_abs, tag = 'smem constant byte address 0x4 - core index']
  #allocation1 [shape = 'u32[144,128]{1,0:T(1,128)}', space=vmem, size = 0x12000, scoped, tag = 'internal scratch']
  #allocation2 [shape = 'f32[128,128]{1,0:T(8,128)}', space=vmem, size = 0x10000, scoped, tag = 'scratch operand']
  %s0 = inlined_call_operand.hbm [shape: s8[128,128], index: 0, kind: input, shape index: {}]
  %s1 = inlined_call_operand.hbm [shape: bf16[128,128], index: 1, kind: input, shape index: {}]
  %s2 = inlined_call_operand.hbm [shape: bf16[2,128], index: 2, kind: input, shape index: {}]
  %s3 = inlined_call_operand.hbm [shape: bf16[128,128], index: 3, kind: input, shape index: {}]
  %s4 = inlined_call_operand.hbm [shape: f32[1,128], index: 4, kind: input, shape index: {}]
  %s5 = inlined_call_operand.hbm [shape: bf16[128,128], index: 5, kind: input, shape index: {}]
  %s6 = inlined_call_operand.hbm [shape: f32[1,128], index: 6, kind: input, shape index: {}]
  %s7 = inlined_call_operand.hbm [shape: f32[1,128], index: 7, kind: input, shape index: {}]
  %s8 = inlined_call_operand.hbm [shape: f32[1,128], index: 8, kind: input, shape index: {}]
  %s9 = inlined_call_operand.hbm [shape: f32[1,2,128], index: 9, kind: output, shape index: {}]
  %s10 = sld [smem:[#allocation0]]
  $region90: #{gin_forward.1} parent=0
    _
  %s12 = ssub.s32 1, %s10
  %s13 = scalar_select 0, %s12, %s10
  $region1: #{gin_forward.1} parent=0
    #allocation3 [shape = 'u8[16384]{0}', space=vmem, size = 0x4000, scoped, tag = 'input window, operand 0, single buffered']
    #allocation4 [shape = 's32[1]{0}', space=sflag, size = 0x4, scoped, tag = 'scoped memory for gin_forward.1']
    #allocation5 [shape = 's32[1]{0}', space=sflag, size = 0x4, scoped, tag = 'scoped memory for gin_forward.1']
    #allocation6 [shape = 'u8[32768]{0}', space=vmem, size = 0x8000, scoped, tag = 'input window, operand 1, single buffered']
    #allocation7 [shape = 's32[1]{0}', space=sflag, size = 0x4, scoped, tag = 'scoped memory for gin_forward.1']
    #allocation8 [shape = 'u8[512]{0}', space=vmem, size = 0x400, scoped, tag = 'input window, operand 2, single buffered']
    #allocation9 [shape = 'u8[32768]{0}', space=vmem, size = 0x8000, scoped, tag = 'input window, operand 3, single buffered']
    #allocation10 [shape = 's32[1]{0}', space=sflag, size = 0x4, scoped, tag = 'scoped memory for gin_forward.1']
    #allocation11 [shape = 'u8[512]{0}', space=vmem, size = 0x400, scoped, tag = 'input window, operand 4, single buffered']
    #allocation12 [shape = 'u8[32768]{0}', space=vmem, size = 0x8000, scoped, tag = 'input window, operand 5, single buffered']
    #allocation13 [shape = 's32[1]{0}', space=sflag, size = 0x4, scoped, tag = 'scoped memory for gin_forward.1']
    #allocation14 [shape = 'u8[512]{0}', space=vmem, size = 0x400, scoped, tag = 'input window, operand 6, single buffered']
    #allocation15 [shape = 'u8[512]{0}', space=vmem, size = 0x400, scoped, tag = 'input window, operand 7, single buffered']
    #allocation16 [shape = 's32[1]{0}', space=sflag, size = 0x4, scoped, tag = 'scoped memory for gin_forward.1']
    #allocation17 [shape = 'u8[512]{0}', space=vmem, size = 0x400, scoped, tag = 'input window, operand 8, single buffered']
    #allocation18 [shape = 'u8[1024]{0}', space=vmem, size = 0x400, scoped, tag = 'output window, operand 0, single buffered']
    %14 = vsyncpa [#allocation4], 0
    %15 = vsyncpa [#allocation7], 0
    %16 = vsyncpa [#allocation10], 0
    %17 = vsyncpa [#allocation13], 0
    %18 = vsyncpa [#allocation16], 0
    %19 = vsyncpa [#allocation5], 0
    // Predicated region
    $region2: #{gin_forward.1} parent=1 // pred_check
      _
    $region3: #{gin_forward.1} parent=1 // pred_check_branch
      %21 = sbr.rel (0) target = $region5
    $region4: #{gin_forward.1} parent=1 // pred_region
      %s23 = ssub.s32 512, 512
      %24 = vsyncadd [#allocation4], %s23
      %s25 = sshll.u32 [#allocation3], 4
      %s26 = int_to_ptr.vmem [resolvable:$true] %s25
      %31 = dma.hbm_to_vmem [thread:$0]  %s0, 512, %s26, [#allocation4], 128, 128, 8
    $region5: #{gin_forward.1} parent=1 // pred_fallthru
      _
    // Predicated region
    $region6: #{gin_forward.1} parent=1 // pred_check
      _
    $region7: #{gin_forward.1} parent=1 // pred_check_branch
      %33 = sbr.rel (0) target = $region9
    $region8: #{gin_forward.1} parent=1 // pred_region
      %s35 = ssub.s32 1024, 1024
      %36 = vsyncadd [#allocation7], %s35
      %s37 = sshll.u32 [#allocation6], 4
      %s38 = int_to_ptr.vmem [resolvable:$true] %s37
      %43 = dma.hbm_to_vmem [thread:$0]  %s1, 1024, %s38, [#allocation7], 64, 64, 4
    $region9: #{gin_forward.1} parent=1 // pred_fallthru
      _
    // Predicated region
    $region10: #{gin_forward.1} parent=1 // pred_check
      _
    $region11: #{gin_forward.1} parent=1 // pred_check_branch
      %45 = sbr.rel (0) target = $region13
    $region12: #{gin_forward.1} parent=1 // pred_region
      %s47 = ssub.s32 16, 16
      %48 = vsyncadd [#allocation7], %s47
      %s50 = sshll.u32 [#allocation8], 4
      %s51 = int_to_ptr.vmem [resolvable:$true] %s50
      %53 = dma.hbm_to_vmem [thread:$0]  %s2, 16, %s51, [#allocation7]
    $region13: #{gin_forward.1} parent=1 // pred_fallthru
      _
    // Predicated region
    $region14: #{gin_forward.1} parent=1 // pred_check
      _
    $region15: #{gin_forward.1} parent=1 // pred_check_branch
      %55 = sbr.rel (0) target = $region17
    $region16: #{gin_forward.1} parent=1 // pred_region
      %s57 = ssub.s32 1024, 1024
      %58 = vsyncadd [#allocation10], %s57
      %s59 = sshll.u32 [#allocation9], 4
      %s60 = int_to_ptr.vmem [resolvable:$true] %s59
      %65 = dma.hbm_to_vmem [thread:$0]  %s3, 1024, %s60, [#allocation10], 64, 64, 4
    $region17: #{gin_forward.1} parent=1 // pred_fallthru
      _
    // Predicated region
    $region18: #{gin_forward.1} parent=1 // pred_check
      _
    $region19: #{gin_forward.1} parent=1 // pred_check_branch
      %67 = sbr.rel (0) target = $region21
    $region20: #{gin_forward.1} parent=1 // pred_region
      %s69 = ssub.s32 16, 16
      %70 = vsyncadd [#allocation10], %s69
      %s72 = sshll.u32 [#allocation11], 4
      %s73 = int_to_ptr.vmem [resolvable:$true] %s72
      %75 = dma.hbm_to_vmem [thread:$0]  %s4, 16, %s73, [#allocation10]
    $region21: #{gin_forward.1} parent=1 // pred_fallthru
      _
    // Predicated region
    $region22: #{gin_forward.1} parent=1 // pred_check
      _
    $region23: #{gin_forward.1} parent=1 // pred_check_branch
      %77 = sbr.rel (0) target = $region25
    $region24: #{gin_forward.1} parent=1 // pred_region
      %s79 = ssub.s32 1024, 1024
      %80 = vsyncadd [#allocation13], %s79
      %s81 = sshll.u32 [#allocation12], 4
      %s82 = int_to_ptr.vmem [resolvable:$true] %s81
      %87 = dma.hbm_to_vmem [thread:$0]  %s5, 1024, %s82, [#allocation13], 64, 64, 4
    $region25: #{gin_forward.1} parent=1 // pred_fallthru
      _
    // Predicated region
    $region26: #{gin_forward.1} parent=1 // pred_check
      _
    $region27: #{gin_forward.1} parent=1 // pred_check_branch
      %89 = sbr.rel (0) target = $region29
    $region28: #{gin_forward.1} parent=1 // pred_region
      %s91 = ssub.s32 16, 16
      %92 = vsyncadd [#allocation13], %s91
      %s94 = sshll.u32 [#allocation14], 4
      %s95 = int_to_ptr.vmem [resolvable:$true] %s94
      %97 = dma.hbm_to_vmem [thread:$0]  %s6, 16, %s95, [#allocation13]
    $region29: #{gin_forward.1} parent=1 // pred_fallthru
      _
    // Predicated region
    $region30: #{gin_forward.1} parent=1 // pred_check
      _
    $region31: #{gin_forward.1} parent=1 // pred_check_branch
      %99 = sbr.rel (0) target = $region33
    $region32: #{gin_forward.1} parent=1 // pred_region
      %s101 = ssub.s32 16, 16
      %102 = vsyncadd [#allocation16], %s101
      %s104 = sshll.u32 [#allocation15], 4
      %s105 = int_to_ptr.vmem [resolvable:$true] %s104
      %107 = dma.hbm_to_vmem [thread:$0]  %s7, 16, %s105, [#allocation16]
    $region33: #{gin_forward.1} parent=1 // pred_fallthru
      _
    // Predicated region
    $region34: #{gin_forward.1} parent=1 // pred_check
      _
    $region35: #{gin_forward.1} parent=1 // pred_check_branch
      %109 = sbr.rel (0) target = $region37
    $region36: #{gin_forward.1} parent=1 // pred_region
      %s111 = ssub.s32 16, 16
      %112 = vsyncadd [#allocation16], %s111
      %s114 = sshll.u32 [#allocation17], 4
      %s115 = int_to_ptr.vmem [resolvable:$true] %s114
      %117 = dma.hbm_to_vmem [thread:$0]  %s8, 16, %s115, [#allocation16]
    $region37: #{gin_forward.1} parent=1 // pred_fallthru
      _
    // Predicated region
    $region38: #{gin_forward.1} parent=1 // pred_check
      _
    $region39: #{gin_forward.1} parent=1 // pred_check_branch
      %119 = sbr.rel (0) target = $region41
    $region40: #{gin_forward.1} parent=1 // pred_region
      %120 = dma.done [#allocation4], 512
    $region41: #{gin_forward.1} parent=1 // pred_fallthru
      _
    // Predicated region
    $region42: #{gin_forward.1} parent=1 // pred_check
      _
    $region43: #{gin_forward.1} parent=1 // pred_check_branch
      %122 = sbr.rel (0) target = $region45
    $region44: #{gin_forward.1} parent=1 // pred_region
      %123 = dma.done [#allocation7], 1024
    $region45: #{gin_forward.1} parent=1 // pred_fallthru
      _
    // Predicated region
    $region46: #{gin_forward.1} parent=1 // pred_check
      _
    $region47: #{gin_forward.1} parent=1 // pred_check_branch
      %125 = sbr.rel (0) target = $region49
    $region48: #{gin_forward.1} parent=1 // pred_region
      %126 = dma.done [#allocation7], 16
    $region49: #{gin_forward.1} parent=1 // pred_fallthru
      _
    // Predicated region
    $region50: #{gin_forward.1} parent=1 // pred_check
      _
    $region51: #{gin_forward.1} parent=1 // pred_check_branch
      %128 = sbr.rel (0) target = $region53
    $region52: #{gin_forward.1} parent=1 // pred_region
      %129 = dma.done [#allocation10], 1024
    $region53: #{gin_forward.1} parent=1 // pred_fallthru
      _
    // Predicated region
    $region54: #{gin_forward.1} parent=1 // pred_check
      _
    $region55: #{gin_forward.1} parent=1 // pred_check_branch
      %131 = sbr.rel (0) target = $region57
    $region56: #{gin_forward.1} parent=1 // pred_region
      %132 = dma.done [#allocation10], 16
    $region57: #{gin_forward.1} parent=1 // pred_fallthru
      _
    // Predicated region
    $region58: #{gin_forward.1} parent=1 // pred_check
      _
    $region59: #{gin_forward.1} parent=1 // pred_check_branch
      %134 = sbr.rel (0) target = $region61
    $region60: #{gin_forward.1} parent=1 // pred_region
      %135 = dma.done [#allocation13], 1024
    $region61: #{gin_forward.1} parent=1 // pred_fallthru
      _
    // Predicated region
    $region62: #{gin_forward.1} parent=1 // pred_check
      _
    $region63: #{gin_forward.1} parent=1 // pred_check_branch
      %137 = sbr.rel (0) target = $region65
    $region64: #{gin_forward.1} parent=1 // pred_region
      %138 = dma.done [#allocation13], 16
    $region65: #{gin_forward.1} parent=1 // pred_fallthru
      _
    // Predicated region
    $region66: #{gin_forward.1} parent=1 // pred_check
      _
    $region67: #{gin_forward.1} parent=1 // pred_check_branch
      %140 = sbr.rel (0) target = $region69
    $region68: #{gin_forward.1} parent=1 // pred_region
      %141 = dma.done [#allocation16], 16
    $region69: #{gin_forward.1} parent=1 // pred_fallthru
      _
    // Predicated region
    $region70: #{gin_forward.1} parent=1 // pred_check
      _
    $region71: #{gin_forward.1} parent=1 // pred_check_branch
      %143 = sbr.rel (0) target = $region73
    $region72: #{gin_forward.1} parent=1 // pred_region
      %144 = dma.done [#allocation16], 16
    $region73: #{gin_forward.1} parent=1 // pred_fallthru
      _
    %p146 = scmp.eq.s32.totalorder 0, 0
    // Predicated region
    $region74: #{gin_forward.1} parent=1 // pred_check
      %p147 = pneg %p146
    $region75: #{gin_forward.1} parent=1 // pred_check_branch
      %149 = sbr.rel (%p147) target = $region77
    $region76: #{gin_forward.1} parent=1 // pred_region
      %150 = vst [vmem:[#allocation2] sm:$0xff] 0.0
      %151 = vst [vmem:[#allocation2 + $0x8] sm:$0xff] 0.0
      %152 = vst [vmem:[#allocation2 + $0x10] sm:$0xff] 0.0
      %153 = vst [vmem:[#allocation2 + $0x18] sm:$0xff] 0.0
      %154 = vst [vmem:[#allocation2 + $0x20] sm:$0xff] 0.0
      %155 = vst [vmem:[#allocation2 + $0x28] sm:$0xff] 0.0
      %156 = vst [vmem:[#allocation2 + $0x30] sm:$0xff] 0.0
      %157 = vst [vmem:[#allocation2 + $0x38] sm:$0xff] 0.0
      %158 = vst [vmem:[#allocation2 + $0x40] sm:$0xff] 0.0
      %159 = vst [vmem:[#allocation2 + $0x48] sm:$0xff] 0.0
      %160 = vst [vmem:[#allocation2 + $0x50] sm:$0xff] 0.0
      %161 = vst [vmem:[#allocation2 + $0x58] sm:$0xff] 0.0
      %162 = vst [vmem:[#allocation2 + $0x60] sm:$0xff] 0.0
      %163 = vst [vmem:[#allocation2 + $0x68] sm:$0xff] 0.0
      %164 = vst [vmem:[#allocation2 + $0x70] sm:$0xff] 0.0
      %165 = vst [vmem:[#allocation2 + $0x78] sm:$0xff] 0.0
    $region77: #{gin_forward.1} parent=1 // pred_fallthru
      _
    %v166 = vld [vmem:[#allocation3] sm:$0xff]
    %v167 = vld [vmem:[#allocation3 + $0x8] sm:$0xff]
    %v168 = vld [vmem:[#allocation3 + $0x10] sm:$0xff]
    %v169 = vld [vmem:[#allocation3 + $0x18] sm:$0xff]
    %v170 = vunpack.c.l.s8.bf16 %v166
    %v171 = vunpack.c.h.s8.bf16 %v166
    %v172 = vunpack.c.l.s8.bf16 %v167
    %v173 = vunpack.c.h.s8.bf16 %v167
    %v174 = vunpack.c.l.s8.bf16 %v168
    %v175 = vunpack.c.h.s8.bf16 %v168
    %v176 = vunpack.c.l.s8.bf16 %v169
    %v177 = vunpack.c.h.s8.bf16 %v169
    %v178 = vld [vmem:[#allocation6] sm:$0xf]
    %v179 = vld [vmem:[#allocation6 + $0x4] sm:$0xf]
    %v180 = vld [vmem:[#allocation6 + $0x8] sm:$0xf]
    %v181 = vld [vmem:[#allocation6 + $0xc] sm:$0xf]
    %v182 = vld [vmem:[#allocation6 + $0x10] sm:$0xf]
    %v183 = vld [vmem:[#allocation6 + $0x14] sm:$0xf]
    %v184 = vld [vmem:[#allocation6 + $0x18] sm:$0xf]
    %v185 = vld [vmem:[#allocation6 + $0x1c] sm:$0xf]
    %v186 = vld [vmem:[#allocation6 + $0x20] sm:$0xf]
    %v187 = vld [vmem:[#allocation6 + $0x24] sm:$0xf]
    %v188 = vld [vmem:[#allocation6 + $0x28] sm:$0xf]
    %v189 = vld [vmem:[#allocation6 + $0x2c] sm:$0xf]
    %v190 = vld [vmem:[#allocation6 + $0x30] sm:$0xf]
    %v191 = vld [vmem:[#allocation6 + $0x34] sm:$0xf]
    %v192 = vld [vmem:[#allocation6 + $0x38] sm:$0xf]
    %v193 = vld [vmem:[#allocation6 + $0x3c] sm:$0xf]
    %v194 = vld [vmem:[#allocation2] sm:$0xff]
    %v195 = vld [vmem:[#allocation2 + $0x8] sm:$0xff]
    %v196 = vld [vmem:[#allocation2 + $0x10] sm:$0xff]
    %v197 = vld [vmem:[#allocation2 + $0x18] sm:$0xff]
    %v198 = vld [vmem:[#allocation2 + $0x20] sm:$0xff]
    %v199 = vld [vmem:[#allocation2 + $0x28] sm:$0xff]
    %v200 = vld [vmem:[#allocation2 + $0x30] sm:$0xff]
    %v201 = vld [vmem:[#allocation2 + $0x38] sm:$0xff]
    %v202 = vld [vmem:[#allocation2 + $0x40] sm:$0xff]
    %v203 = vld [vmem:[#allocation2 + $0x48] sm:$0xff]
    %v204 = vld [vmem:[#allocation2 + $0x50] sm:$0xff]
    %v205 = vld [vmem:[#allocation2 + $0x58] sm:$0xff]
    %v206 = vld [vmem:[#allocation2 + $0x60] sm:$0xff]
    %v207 = vld [vmem:[#allocation2 + $0x68] sm:$0xff]
    %v208 = vld [vmem:[#allocation2 + $0x70] sm:$0xff]
    %v209 = vld [vmem:[#allocation2 + $0x78] sm:$0xff]
    %v226 = vunpack.c.l.b16 %v178
    %v227 = vunpack.c.l.b16 %v179
    %v228 = vunpack.c.l.b16 %v180
    %v229 = vunpack.c.l.b16 %v181
    %v230 = vunpack.c.l.b16 %v182
    %v231 = vunpack.c.l.b16 %v183
    %v232 = vunpack.c.l.b16 %v184
    %v233 = vunpack.c.l.b16 %v185
    %v234 = vunpack.c.l.b16 %v186
    %v235 = vunpack.c.l.b16 %v187
    %v236 = vunpack.c.l.b16 %v188
    %v237 = vunpack.c.l.b16 %v189
    %v238 = vunpack.c.l.b16 %v190
    %v239 = vunpack.c.l.b16 %v191
    %v240 = vunpack.c.l.b16 %v192
    %v241 = vunpack.c.l.b16 %v193
    %v242 = vpack.c.b16 %v227, %v226
    %v243 = vpack.c.b16 %v229, %v228
    %v244 = vpack.c.b16 %v231, %v230
    %v245 = vpack.c.b16 %v233, %v232
    %v246 = vpack.c.b16 %v235, %v234
    %v247 = vpack.c.b16 %v237, %v236
    %v248 = vpack.c.b16 %v239, %v238
    %v249 = vpack.c.b16 %v241, %v240
    %258 = vmatprep.subr.bf16.mxu0 0
    %259 = vmatpush1.bf16.msra.mxu0 %v242
    %260 = vmatprep.subr.bf16.mxu0 0
    %261 = vmatpush1.bf16.msra.mxu0 %v243
    %262 = vmatprep.subr.bf16.mxu0 0
    %263 = vmatpush1.bf16.msra.mxu0 %v244
    %264 = vmatprep.subr.bf16.mxu0 0
    %265 = vmatpush1.bf16.msra.mxu0 %v245
    %266 = vmatprep.subr.bf16.mxu0 0
    %267 = vmatpush1.bf16.msra.mxu0 %v246
    %268 = vmatprep.subr.bf16.mxu0 0
    %269 = vmatpush1.bf16.msra.mxu0 %v247
    %270 = vmatprep.subr.bf16.mxu0 0
    %271 = vmatpush1.bf16.msra.mxu0 %v248
    %272 = vmatprep.subr.bf16.mxu0 0
    %273 = vmatpush1.bf16.msra.mxu0 %v249
    %274 = vmatprep.subr.bf16.mxu0 0
    %275 = vmatpush1.bf16.msra.mxu0 0
    %276 = vmatprep.subr.bf16.mxu0 0
    %277 = vmatpush1.bf16.msra.mxu0 0
    %278 = vmatprep.subr.bf16.mxu0 0
    %279 = vmatpush1.bf16.msra.mxu0 0
    %280 = vmatprep.subr.bf16.mxu0 0
    %281 = vmatpush1.bf16.msra.mxu0 0
    %282 = vmatprep.subr.bf16.mxu0 0
    %283 = vmatpush1.bf16.msra.mxu0 0
    %284 = vmatprep.subr.bf16.mxu0 0
    %285 = vmatpush1.bf16.msra.mxu0 0
    %286 = vmatprep.subr.bf16.mxu0 0
    %287 = vmatpush1.bf16.msra.mxu0 0
    %288 = vmatprep.subr.bf16.mxu0 0
    %289 = vmatpush1.bf16.msra.mxu0 0
    %290 = vmatprep.mubr.bf16.mxu0 0
    %291 = vmatmul.mubr.bf16.gmra.mrb[0].mxu0 %v170
    %v292 = vpop.f32.mrb[0].mxu0
    %v293 = vadd.f32 0.0, %v292
    %v294 = vpop.f32.mrb[0].mxu0
    %v295 = vpop.f32.mrb[0].mxu0
    %v296 = vadd.f32 0.0, %v295
    %v297 = vpop.f32.mrb[0].mxu0
    %298 = vmatprep.mubr.bf16.mxu0 0
    %299 = vmatmul.mubr.bf16.gmra.mrb[0].mxu0 %v171
    %v300 = vpop.f32.mrb[0].mxu0
    %v301 = vadd.f32 0.0, %v300
    %v302 = vpop.f32.mrb[0].mxu0
    %v303 = vpop.f32.mrb[0].mxu0
    %v304 = vadd.f32 0.0, %v303
    %v305 = vpop.f32.mrb[0].mxu0
    %306 = vmatprep.mubr.bf16.mxu0 0
    %307 = vmatmul.mubr.bf16.gmra.mrb[0].mxu0 %v172
    %v308 = vpop.f32.mrb[0].mxu0
    %v309 = vadd.f32 0.0, %v308
    %v310 = vpop.f32.mrb[0].mxu0
    %v311 = vpop.f32.mrb[0].mxu0
    %v312 = vadd.f32 0.0, %v311
    %v313 = vpop.f32.mrb[0].mxu0
    %314 = vmatprep.mubr.bf16.mxu0 0
    %315 = vmatmul.mubr.bf16.gmra.mrb[0].mxu0 %v173
    %v316 = vpop.f32.mrb[0].mxu0
    %v317 = vadd.f32 0.0, %v316
    %v318 = vpop.f32.mrb[0].mxu0
    %v319 = vpop.f32.mrb[0].mxu0
    %v320 = vadd.f32 0.0, %v319
    %v321 = vpop.f32.mrb[0].mxu0
    %322 = vmatprep.mubr.bf16.mxu0 0
    %323 = vmatmul.mubr.bf16.gmra.mrb[0].mxu0 %v174
    %v324 = vpop.f32.mrb[0].mxu0
    %v325 = vadd.f32 0.0, %v324
    %v326 = vpop.f32.mrb[0].mxu0
    %v327 = vpop.f32.mrb[0].mxu0
    %v328 = vadd.f32 0.0, %v327
    %v329 = vpop.f32.mrb[0].mxu0
    %330 = vmatprep.mubr.bf16.mxu0 0
    %331 = vmatmul.mubr.bf16.gmra.mrb[0].mxu0 %v175
    %v332 = vpop.f32.mrb[0].mxu0
    %v333 = vadd.f32 0.0, %v332
    %v334 = vpop.f32.mrb[0].mxu0
    %v335 = vpop.f32.mrb[0].mxu0
    %v336 = vadd.f32 0.0, %v335
    %v337 = vpop.f32.mrb[0].mxu0
    %338 = vmatprep.mubr.bf16.mxu0 0
    %339 = vmatmul.mubr.bf16.gmra.mrb[0].mxu0 %v176
    %v340 = vpop.f32.mrb[0].mxu0
    %v341 = vadd.f32 0.0, %v340
    %v342 = vpop.f32.mrb[0].mxu0
    %v343 = vpop.f32.mrb[0].mxu0
    %v344 = vadd.f32 0.0, %v343
    %v345 = vpop.f32.mrb[0].mxu0
    %346 = vmatprep.mubr.bf16.mxu0 0
    %347 = vmatmul.mubr.bf16.gmra.mrb[0].mxu0 %v177
    %v348 = vpop.f32.mrb[0].mxu0
    %v349 = vadd.f32 0.0, %v348
    %v350 = vpop.f32.mrb[0].mxu0
    %v351 = vpop.f32.mrb[0].mxu0
    %v352 = vadd.f32 0.0, %v351
    %v353 = vpop.f32.mrb[0].mxu0
    %354 = vdwg.mxu0
    %v355 = vadd.f32 %v194, %v293
    %v356 = vadd.f32 %v195, %v296
    %v357 = vadd.f32 %v196, %v301
    %v358 = vadd.f32 %v197, %v304
    %v359 = vadd.f32 %v198, %v309
    %v360 = vadd.f32 %v199, %v312
    %v361 = vadd.f32 %v200, %v317
    %v362 = vadd.f32 %v201, %v320
    %v363 = vadd.f32 %v202, %v325
    %v364 = vadd.f32 %v203, %v328
    %v365 = vadd.f32 %v204, %v333
    %v366 = vadd.f32 %v205, %v336
    %v367 = vadd.f32 %v206, %v341
    %v368 = vadd.f32 %v207, %v344
    %v369 = vadd.f32 %v208, %v349
    %v370 = vadd.f32 %v209, %v352
    %371 = vst [vmem:[#allocation2] sm:$0xff] %v355
    %372 = vst [vmem:[#allocation2 + $0x8] sm:$0xff] %v356
    %373 = vst [vmem:[#allocation2 + $0x10] sm:$0xff] %v357
    %374 = vst [vmem:[#allocation2 + $0x18] sm:$0xff] %v358
    %375 = vst [vmem:[#allocation2 + $0x20] sm:$0xff] %v359
    %376 = vst [vmem:[#allocation2 + $0x28] sm:$0xff] %v360
    %377 = vst [vmem:[#allocation2 + $0x30] sm:$0xff] %v361
    %378 = vst [vmem:[#allocation2 + $0x38] sm:$0xff] %v362
    %379 = vst [vmem:[#allocation2 + $0x40] sm:$0xff] %v363
    %380 = vst [vmem:[#allocation2 + $0x48] sm:$0xff] %v364
    %381 = vst [vmem:[#allocation2 + $0x50] sm:$0xff] %v365
    %382 = vst [vmem:[#allocation2 + $0x58] sm:$0xff] %v366
    %383 = vst [vmem:[#allocation2 + $0x60] sm:$0xff] %v367
    %384 = vst [vmem:[#allocation2 + $0x68] sm:$0xff] %v368
    %385 = vst [vmem:[#allocation2 + $0x70] sm:$0xff] %v369
    %386 = vst [vmem:[#allocation2 + $0x78] sm:$0xff] %v370
    // Predicated region
    $region78: #{gin_forward.1} parent=1 // pred_check
      %p387 = pneg %p146
    $region79: #{gin_forward.1} parent=1 // pred_check_branch
      %389 = sbr.rel (%p387) target = $region81
    $region80: #{gin_forward.1} parent=1 // pred_region
      %v390 = vld [vmem:[#allocation2] sm:$0xff]
      %v391 = vld [vmem:[#allocation2 + $0x8] sm:$0xff]
      %v392 = vld [vmem:[#allocation2 + $0x10] sm:$0xff]
      %v393 = vld [vmem:[#allocation2 + $0x18] sm:$0xff]
      %v394 = vld [vmem:[#allocation2 + $0x20] sm:$0xff]
      %v395 = vld [vmem:[#allocation2 + $0x28] sm:$0xff]
      %v396 = vld [vmem:[#allocation2 + $0x30] sm:$0xff]
      %v397 = vld [vmem:[#allocation2 + $0x38] sm:$0xff]
      %v398 = vld [vmem:[#allocation2 + $0x40] sm:$0xff]
      %v399 = vld [vmem:[#allocation2 + $0x48] sm:$0xff]
      %v400 = vld [vmem:[#allocation2 + $0x50] sm:$0xff]
      %v401 = vld [vmem:[#allocation2 + $0x58] sm:$0xff]
      %v402 = vld [vmem:[#allocation2 + $0x60] sm:$0xff]
      %v403 = vld [vmem:[#allocation2 + $0x68] sm:$0xff]
      %v404 = vld [vmem:[#allocation2 + $0x70] sm:$0xff]
      %v405 = vld [vmem:[#allocation2 + $0x78] sm:$0xff]
      %v406 = vpack.c.bf16 %v391, %v390
      %v407 = vpack.c.bf16 %v393, %v392
      %v408 = vpack.c.bf16 %v395, %v394
      %v409 = vpack.c.bf16 %v397, %v396
      %v410 = vpack.c.bf16 %v399, %v398
      %v411 = vpack.c.bf16 %v401, %v400
      %v412 = vpack.c.bf16 %v403, %v402
      %v413 = vpack.c.bf16 %v405, %v404
      %v414 = vld [vmem:[#allocation9] sm:$0xf]
      %v415 = vld [vmem:[#allocation9 + $0x4] sm:$0xf]
      %v416 = vld [vmem:[#allocation9 + $0x8] sm:$0xf]
      %v417 = vld [vmem:[#allocation9 + $0xc] sm:$0xf]
      %v418 = vld [vmem:[#allocation9 + $0x10] sm:$0xf]
      %v419 = vld [vmem:[#allocation9 + $0x14] sm:$0xf]
      %v420 = vld [vmem:[#allocation9 + $0x18] sm:$0xf]
      %v421 = vld [vmem:[#allocation9 + $0x1c] sm:$0xf]
      %v422 = vld [vmem:[#allocation9 + $0x20] sm:$0xf]
      %v423 = vld [vmem:[#allocation9 + $0x24] sm:$0xf]
      %v424 = vld [vmem:[#allocation9 + $0x28] sm:$0xf]
      %v425 = vld [vmem:[#allocation9 + $0x2c] sm:$0xf]
      %v426 = vld [vmem:[#allocation9 + $0x30] sm:$0xf]
      %v427 = vld [vmem:[#allocation9 + $0x34] sm:$0xf]
      %v428 = vld [vmem:[#allocation9 + $0x38] sm:$0xf]
      %v429 = vld [vmem:[#allocation9 + $0x3c] sm:$0xf]
      %v430 = vld [vmem:[#allocation11] sm:$0x1]
      %v432 = vlaneseq
      %v433 = vshrl.u32 %v432, 7
      %v434 = vsub.s32 0, %v433
      %v435 = vrot.slane %v430, %v434
      %v453 = vunpack.c.l.b16 %v414
      %v454 = vunpack.c.l.b16 %v415
      %v455 = vunpack.c.l.b16 %v416
      %v456 = vunpack.c.l.b16 %v417
      %v457 = vunpack.c.l.b16 %v418
      %v458 = vunpack.c.l.b16 %v419
      %v459 = vunpack.c.l.b16 %v420
      %v460 = vunpack.c.l.b16 %v421
      %v461 = vunpack.c.l.b16 %v422
      %v462 = vunpack.c.l.b16 %v423
      %v463 = vunpack.c.l.b16 %v424
      %v464 = vunpack.c.l.b16 %v425
      %v465 = vunpack.c.l.b16 %v426
      %v466 = vunpack.c.l.b16 %v427
      %v467 = vunpack.c.l.b16 %v428
      %v468 = vunpack.c.l.b16 %v429
      %v469 = vpack.c.b16 %v454, %v453
      %v470 = vpack.c.b16 %v456, %v455
      %v471 = vpack.c.b16 %v458, %v457
      %v472 = vpack.c.b16 %v460, %v459
      %v473 = vpack.c.b16 %v462, %v461
      %v474 = vpack.c.b16 %v464, %v463
      %v475 = vpack.c.b16 %v466, %v465
      %v476 = vpack.c.b16 %v468, %v467
      %485 = vmatprep.subr.bf16.mxu0 0
      %486 = vmatpush1.bf16.msra.mxu0 %v469
      %487 = vmatprep.subr.bf16.mxu0 0
      %488 = vmatpush1.bf16.msra.mxu0 %v470
      %489 = vmatprep.subr.bf16.mxu0 0
      %490 = vmatpush1.bf16.msra.mxu0 %v471
      %491 = vmatprep.subr.bf16.mxu0 0
      %492 = vmatpush1.bf16.msra.mxu0 %v472
      %493 = vmatprep.subr.bf16.mxu0 0
      %494 = vmatpush1.bf16.msra.mxu0 %v473
      %495 = vmatprep.subr.bf16.mxu0 0
      %496 = vmatpush1.bf16.msra.mxu0 %v474
      %497 = vmatprep.subr.bf16.mxu0 0
      %498 = vmatpush1.bf16.msra.mxu0 %v475
      %499 = vmatprep.subr.bf16.mxu0 0
      %500 = vmatpush1.bf16.msra.mxu0 %v476
      %501 = vmatprep.subr.bf16.mxu0 0
      %502 = vmatpush1.bf16.msra.mxu0 0
      %503 = vmatprep.subr.bf16.mxu0 0
      %504 = vmatpush1.bf16.msra.mxu0 0
      %505 = vmatprep.subr.bf16.mxu0 0
      %506 = vmatpush1.bf16.msra.mxu0 0
      %507 = vmatprep.subr.bf16.mxu0 0
      %508 = vmatpush1.bf16.msra.mxu0 0
      %509 = vmatprep.subr.bf16.mxu0 0
      %510 = vmatpush1.bf16.msra.mxu0 0
      %511 = vmatprep.subr.bf16.mxu0 0
      %512 = vmatpush1.bf16.msra.mxu0 0
      %513 = vmatprep.subr.bf16.mxu0 0
      %514 = vmatpush1.bf16.msra.mxu0 0
      %515 = vmatprep.subr.bf16.mxu0 0
      %516 = vmatpush1.bf16.msra.mxu0 0
      %517 = vmatprep.mubr.bf16.mxu0 0
      %518 = vmatmul.mubr.bf16.gmra.mrb[0].mxu0 %v406
      %v519 = vpop.f32.mrb[0].mxu0
      %v520 = vadd.f32 %v435, %v519
      %v521 = vpop.f32.mrb[0].mxu0
      %v522 = vpop.f32.mrb[0].mxu0
      %v523 = vadd.f32 %v435, %v522
      %v524 = vpop.f32.mrb[0].mxu0
      %525 = vmatprep.mubr.bf16.mxu0 0
      %526 = vmatmul.mubr.bf16.gmra.mrb[0].mxu0 %v407
      %v527 = vpop.f32.mrb[0].mxu0
      %v528 = vadd.f32 %v435, %v527
      %v529 = vpop.f32.mrb[0].mxu0
      %v530 = vpop.f32.mrb[0].mxu0
      %v531 = vadd.f32 %v435, %v530
      %v532 = vpop.f32.mrb[0].mxu0
      %533 = vmatprep.mubr.bf16.mxu0 0
      %534 = vmatmul.mubr.bf16.gmra.mrb[0].mxu0 %v408
      %v535 = vpop.f32.mrb[0].mxu0
      %v536 = vadd.f32 %v435, %v535
      %v537 = vpop.f32.mrb[0].mxu0
      %v538 = vpop.f32.mrb[0].mxu0
      %v539 = vadd.f32 %v435, %v538
      %v540 = vpop.f32.mrb[0].mxu0
      %541 = vmatprep.mubr.bf16.mxu0 0
      %542 = vmatmul.mubr.bf16.gmra.mrb[0].mxu0 %v409
      %v543 = vpop.f32.mrb[0].mxu0
      %v544 = vadd.f32 %v435, %v543
      %v545 = vpop.f32.mrb[0].mxu0
      %v546 = vpop.f32.mrb[0].mxu0
      %v547 = vadd.f32 %v435, %v546
      %v548 = vpop.f32.mrb[0].mxu0
      %549 = vmatprep.mubr.bf16.mxu0 0
      %550 = vmatmul.mubr.bf16.gmra.mrb[0].mxu0 %v410
      %v551 = vpop.f32.mrb[0].mxu0
      %v552 = vadd.f32 %v435, %v551
      %v553 = vpop.f32.mrb[0].mxu0
      %v554 = vpop.f32.mrb[0].mxu0
      %v555 = vadd.f32 %v435, %v554
      %v556 = vpop.f32.mrb[0].mxu0
      %557 = vmatprep.mubr.bf16.mxu0 0
      %558 = vmatmul.mubr.bf16.gmra.mrb[0].mxu0 %v411
      %v559 = vpop.f32.mrb[0].mxu0
      %v560 = vadd.f32 %v435, %v559
      %v561 = vpop.f32.mrb[0].mxu0
      %v562 = vpop.f32.mrb[0].mxu0
      %v563 = vadd.f32 %v435, %v562
      %v564 = vpop.f32.mrb[0].mxu0
      %565 = vmatprep.mubr.bf16.mxu0 0
      %566 = vmatmul.mubr.bf16.gmra.mrb[0].mxu0 %v412
      %v567 = vpop.f32.mrb[0].mxu0
      %v568 = vadd.f32 %v435, %v567
      %v569 = vpop.f32.mrb[0].mxu0
      %v570 = vpop.f32.mrb[0].mxu0
      %v571 = vadd.f32 %v435, %v570
      %v572 = vpop.f32.mrb[0].mxu0
      %573 = vmatprep.mubr.bf16.mxu0 0
      %574 = vmatmul.mubr.bf16.gmra.mrb[0].mxu0 %v413
      %v575 = vpop.f32.mrb[0].mxu0
      %v576 = vadd.f32 %v435, %v575
      %v577 = vpop.f32.mrb[0].mxu0
      %v578 = vpop.f32.mrb[0].mxu0
      %v579 = vadd.f32 %v435, %v578
      %v580 = vpop.f32.mrb[0].mxu0
      %581 = vdwg.mxu0
      %v582 = vmax.f32 %v520, 0.0
      %v583 = vmax.f32 %v523, 0.0
      %v584 = vmax.f32 %v528, 0.0
      %v585 = vmax.f32 %v531, 0.0
      %v586 = vmax.f32 %v536, 0.0
      %v587 = vmax.f32 %v539, 0.0
      %v588 = vmax.f32 %v544, 0.0
      %v589 = vmax.f32 %v547, 0.0
      %v590 = vmax.f32 %v552, 0.0
      %v591 = vmax.f32 %v555, 0.0
      %v592 = vmax.f32 %v560, 0.0
      %v593 = vmax.f32 %v563, 0.0
      %v594 = vmax.f32 %v568, 0.0
      %v595 = vmax.f32 %v571, 0.0
      %v596 = vmax.f32 %v576, 0.0
      %v597 = vmax.f32 %v579, 0.0
      %v598 = vpack.c.bf16 %v583, %v582
      %v599 = vpack.c.bf16 %v585, %v584
      %v600 = vpack.c.bf16 %v587, %v586
      %v601 = vpack.c.bf16 %v589, %v588
      %v602 = vpack.c.bf16 %v591, %v590
      %v603 = vpack.c.bf16 %v593, %v592
      %v604 = vpack.c.bf16 %v595, %v594
      %v605 = vpack.c.bf16 %v597, %v596
      %v606 = vld [vmem:[#allocation12] sm:$0xf]
      %v607 = vld [vmem:[#allocation12 + $0x4] sm:$0xf]
      %v608 = vld [vmem:[#allocation12 + $0x8] sm:$0xf]
      %v609 = vld [vmem:[#allocation12 + $0xc] sm:$0xf]
      %v610 = vld [vmem:[#allocation12 + $0x10] sm:$0xf]
      %v611 = vld [vmem:[#allocation12 + $0x14] sm:$0xf]
      %v612 = vld [vmem:[#allocation12 + $0x18] sm:$0xf]
      %v613 = vld [vmem:[#allocation12 + $0x1c] sm:$0xf]
      %v614 = vld [vmem:[#allocation12 + $0x20] sm:$0xf]
      %v615 = vld [vmem:[#allocation12 + $0x24] sm:$0xf]
      %v616 = vld [vmem:[#allocation12 + $0x28] sm:$0xf]
      %v617 = vld [vmem:[#allocation12 + $0x2c] sm:$0xf]
      %v618 = vld [vmem:[#allocation12 + $0x30] sm:$0xf]
      %v619 = vld [vmem:[#allocation12 + $0x34] sm:$0xf]
      %v620 = vld [vmem:[#allocation12 + $0x38] sm:$0xf]
      %v621 = vld [vmem:[#allocation12 + $0x3c] sm:$0xf]
      %v622 = vld [vmem:[#allocation14] sm:$0x1]
      %v624 = vlaneseq
      %v625 = vshrl.u32 %v624, 7
      %v626 = vsub.s32 0, %v625
      %v627 = vrot.slane %v622, %v626
      %v645 = vunpack.c.l.b16 %v606
      %v646 = vunpack.c.l.b16 %v607
      %v647 = vunpack.c.l.b16 %v608
      %v648 = vunpack.c.l.b16 %v609
      %v649 = vunpack.c.l.b16 %v610
      %v650 = vunpack.c.l.b16 %v611
      %v651 = vunpack.c.l.b16 %v612
      %v652 = vunpack.c.l.b16 %v613
      %v653 = vunpack.c.l.b16 %v614
      %v654 = vunpack.c.l.b16 %v615
      %v655 = vunpack.c.l.b16 %v616
      %v656 = vunpack.c.l.b16 %v617
      %v657 = vunpack.c.l.b16 %v618
      %v658 = vunpack.c.l.b16 %v619
      %v659 = vunpack.c.l.b16 %v620
      %v660 = vunpack.c.l.b16 %v621
      %v661 = vpack.c.b16 %v646, %v645
      %v662 = vpack.c.b16 %v648, %v647
      %v663 = vpack.c.b16 %v650, %v649
      %v664 = vpack.c.b16 %v652, %v651
      %v665 = vpack.c.b16 %v654, %v653
      %v666 = vpack.c.b16 %v656, %v655
      %v667 = vpack.c.b16 %v658, %v657
      %v668 = vpack.c.b16 %v660, %v659
      %677 = vmatprep.subr.bf16.mxu0 0
      %678 = vmatpush1.bf16.msra.mxu0 %v661
      %679 = vmatprep.subr.bf16.mxu0 0
      %680 = vmatpush1.bf16.msra.mxu0 %v662
      %681 = vmatprep.subr.bf16.mxu0 0
      %682 = vmatpush1.bf16.msra.mxu0 %v663
      %683 = vmatprep.subr.bf16.mxu0 0
      %684 = vmatpush1.bf16.msra.mxu0 %v664
      %685 = vmatprep.subr.bf16.mxu0 0
      %686 = vmatpush1.bf16.msra.mxu0 %v665
      %687 = vmatprep.subr.bf16.mxu0 0
      %688 = vmatpush1.bf16.msra.mxu0 %v666
      %689 = vmatprep.subr.bf16.mxu0 0
      %690 = vmatpush1.bf16.msra.mxu0 %v667
      %691 = vmatprep.subr.bf16.mxu0 0
      %692 = vmatpush1.bf16.msra.mxu0 %v668
      %693 = vmatprep.subr.bf16.mxu0 0
      %694 = vmatpush1.bf16.msra.mxu0 0
      %695 = vmatprep.subr.bf16.mxu0 0
      %696 = vmatpush1.bf16.msra.mxu0 0
      %697 = vmatprep.subr.bf16.mxu0 0
      %698 = vmatpush1.bf16.msra.mxu0 0
      %699 = vmatprep.subr.bf16.mxu0 0
      %700 = vmatpush1.bf16.msra.mxu0 0
      %701 = vmatprep.subr.bf16.mxu0 0
      %702 = vmatpush1.bf16.msra.mxu0 0
      %703 = vmatprep.subr.bf16.mxu0 0
      %704 = vmatpush1.bf16.msra.mxu0 0
      %705 = vmatprep.subr.bf16.mxu0 0
      %706 = vmatpush1.bf16.msra.mxu0 0
      %707 = vmatprep.subr.bf16.mxu0 0
      %708 = vmatpush1.bf16.msra.mxu0 0
      %709 = vmatprep.mubr.bf16.mxu0 0
      %710 = vmatmul.mubr.bf16.gmra.mrb[0].mxu0 %v598
      %v711 = vpop.f32.mrb[0].mxu0
      %v712 = vadd.f32 %v627, %v711
      %v713 = vpop.f32.mrb[0].mxu0
      %v714 = vpop.f32.mrb[0].mxu0
      %v715 = vadd.f32 %v627, %v714
      %v716 = vpop.f32.mrb[0].mxu0
      %717 = vmatprep.mubr.bf16.mxu0 0
      %718 = vmatmul.mubr.bf16.gmra.mrb[0].mxu0 %v599
      %v719 = vpop.f32.mrb[0].mxu0
      %v720 = vadd.f32 %v627, %v719
      %v721 = vpop.f32.mrb[0].mxu0
      %v722 = vpop.f32.mrb[0].mxu0
      %v723 = vadd.f32 %v627, %v722
      %v724 = vpop.f32.mrb[0].mxu0
      %725 = vmatprep.mubr.bf16.mxu0 0
      %726 = vmatmul.mubr.bf16.gmra.mrb[0].mxu0 %v600
      %v727 = vpop.f32.mrb[0].mxu0
      %v728 = vadd.f32 %v627, %v727
      %v729 = vpop.f32.mrb[0].mxu0
      %v730 = vpop.f32.mrb[0].mxu0
      %v731 = vadd.f32 %v627, %v730
      %v732 = vpop.f32.mrb[0].mxu0
      %733 = vmatprep.mubr.bf16.mxu0 0
      %734 = vmatmul.mubr.bf16.gmra.mrb[0].mxu0 %v601
      %v735 = vpop.f32.mrb[0].mxu0
      %v736 = vadd.f32 %v627, %v735
      %v737 = vpop.f32.mrb[0].mxu0
      %v738 = vpop.f32.mrb[0].mxu0
      %v739 = vadd.f32 %v627, %v738
      %v740 = vpop.f32.mrb[0].mxu0
      %741 = vmatprep.mubr.bf16.mxu0 0
      %742 = vmatmul.mubr.bf16.gmra.mrb[0].mxu0 %v602
      %v743 = vpop.f32.mrb[0].mxu0
      %v744 = vadd.f32 %v627, %v743
      %v745 = vpop.f32.mrb[0].mxu0
      %v746 = vpop.f32.mrb[0].mxu0
      %v747 = vadd.f32 %v627, %v746
      %v748 = vpop.f32.mrb[0].mxu0
      %749 = vmatprep.mubr.bf16.mxu0 0
      %750 = vmatmul.mubr.bf16.gmra.mrb[0].mxu0 %v603
      %v751 = vpop.f32.mrb[0].mxu0
      %v752 = vadd.f32 %v627, %v751
      %v753 = vpop.f32.mrb[0].mxu0
      %v754 = vpop.f32.mrb[0].mxu0
      %v755 = vadd.f32 %v627, %v754
      %v756 = vpop.f32.mrb[0].mxu0
      %757 = vmatprep.mubr.bf16.mxu0 0
      %758 = vmatmul.mubr.bf16.gmra.mrb[0].mxu0 %v604
      %v759 = vpop.f32.mrb[0].mxu0
      %v760 = vadd.f32 %v627, %v759
      %v761 = vpop.f32.mrb[0].mxu0
      %v762 = vpop.f32.mrb[0].mxu0
      %v763 = vadd.f32 %v627, %v762
      %v764 = vpop.f32.mrb[0].mxu0
      %765 = vmatprep.mubr.bf16.mxu0 0
      %766 = vmatmul.mubr.bf16.gmra.mrb[0].mxu0 %v605
      %v767 = vpop.f32.mrb[0].mxu0
      %v768 = vadd.f32 %v627, %v767
      %v769 = vpop.f32.mrb[0].mxu0
      %v770 = vpop.f32.mrb[0].mxu0
      %v771 = vadd.f32 %v627, %v770
      %v772 = vpop.f32.mrb[0].mxu0
      %773 = vdwg.mxu0
      %v774 = vmax.f32 %v712, 0.0
      %v775 = vmax.f32 %v715, 0.0
      %v776 = vmax.f32 %v720, 0.0
      %v777 = vmax.f32 %v723, 0.0
      %v778 = vmax.f32 %v728, 0.0
      %v779 = vmax.f32 %v731, 0.0
      %v780 = vmax.f32 %v736, 0.0
      %v781 = vmax.f32 %v739, 0.0
      %v782 = vmax.f32 %v744, 0.0
      %v783 = vmax.f32 %v747, 0.0
      %v784 = vmax.f32 %v752, 0.0
      %v785 = vmax.f32 %v755, 0.0
      %v786 = vmax.f32 %v760, 0.0
      %v787 = vmax.f32 %v763, 0.0
      %v788 = vmax.f32 %v768, 0.0
      %v789 = vmax.f32 %v771, 0.0
      %v790 = vld [vmem:[#allocation15] sm:$0x1]
      %v792 = vlaneseq
      %v793 = vshrl.u32 %v792, 7
      %v794 = vsub.s32 0, %v793
      %v795 = vrot.slane %v790, %v794
      %v797 = vmul.f32 %v774, %v795
      %v798 = vmul.f32 %v775, %v795
      %v799 = vmul.f32 %v776, %v795
      %v800 = vmul.f32 %v777, %v795
      %v801 = vmul.f32 %v778, %v795
      %v802 = vmul.f32 %v779, %v795
      %v803 = vmul.f32 %v780, %v795
      %v804 = vmul.f32 %v781, %v795
      %v805 = vmul.f32 %v782, %v795
      %v806 = vmul.f32 %v783, %v795
      %v807 = vmul.f32 %v784, %v795
      %v808 = vmul.f32 %v785, %v795
      %v809 = vmul.f32 %v786, %v795
      %v810 = vmul.f32 %v787, %v795
      %v811 = vmul.f32 %v788, %v795
      %v812 = vmul.f32 %v789, %v795
      %v813 = vld [vmem:[#allocation17] sm:$0x1]
      %v815 = vlaneseq
      %v816 = vshrl.u32 %v815, 7
      %v817 = vsub.s32 0, %v816
      %v818 = vrot.slane %v813, %v817
      %v820 = vadd.f32 %v797, %v818
      %v821 = vadd.f32 %v798, %v818
      %v822 = vadd.f32 %v799, %v818
      %v823 = vadd.f32 %v800, %v818
      %v824 = vadd.f32 %v801, %v818
      %v825 = vadd.f32 %v802, %v818
      %v826 = vadd.f32 %v803, %v818
      %v827 = vadd.f32 %v804, %v818
      %v828 = vadd.f32 %v805, %v818
      %v829 = vadd.f32 %v806, %v818
      %v830 = vadd.f32 %v807, %v818
      %v831 = vadd.f32 %v808, %v818
      %v832 = vadd.f32 %v809, %v818
      %v833 = vadd.f32 %v810, %v818
      %v834 = vadd.f32 %v811, %v818
      %v835 = vadd.f32 %v812, %v818
      %v836 = vmax.f32 %v820, 0.0
      %v837 = vmax.f32 %v821, 0.0
      %v838 = vmax.f32 %v822, 0.0
      %v839 = vmax.f32 %v823, 0.0
      %v840 = vmax.f32 %v824, 0.0
      %v841 = vmax.f32 %v825, 0.0
      %v842 = vmax.f32 %v826, 0.0
      %v843 = vmax.f32 %v827, 0.0
      %v844 = vmax.f32 %v828, 0.0
      %v845 = vmax.f32 %v829, 0.0
      %v846 = vmax.f32 %v830, 0.0
      %v847 = vmax.f32 %v831, 0.0
      %v848 = vmax.f32 %v832, 0.0
      %v849 = vmax.f32 %v833, 0.0
      %v850 = vmax.f32 %v834, 0.0
      %v851 = vmax.f32 %v835, 0.0
      %v852 = vld [vmem:[#allocation8] sm:$0x1]
      %v853 = vpack.c.bf16 %v837, %v836
      %v854 = vpack.c.bf16 %v839, %v838
      %v855 = vpack.c.bf16 %v841, %v840
      %v856 = vpack.c.bf16 %v843, %v842
      %v857 = vpack.c.bf16 %v845, %v844
      %v858 = vpack.c.bf16 %v847, %v846
      %v859 = vpack.c.bf16 %v849, %v848
      %v860 = vpack.c.bf16 %v851, %v850
      %861 = vmatprep.subr.bf16.mxu0 0
      %862 = vmatpush1.bf16.msra.mxu0 %v853
      %863 = vmatprep.subr.bf16.mxu0 0
      %864 = vmatpush1.bf16.msra.mxu0 %v854
      %865 = vmatprep.subr.bf16.mxu0 0
      %866 = vmatpush1.bf16.msra.mxu0 %v855
      %867 = vmatprep.subr.bf16.mxu0 0
      %868 = vmatpush1.bf16.msra.mxu0 %v856
      %869 = vmatprep.subr.bf16.mxu0 0
      %870 = vmatpush1.bf16.msra.mxu0 %v857
      %871 = vmatprep.subr.bf16.mxu0 0
      %872 = vmatpush1.bf16.msra.mxu0 %v858
      %873 = vmatprep.subr.bf16.mxu0 0
      %874 = vmatpush1.bf16.msra.mxu0 %v859
      %875 = vmatprep.subr.bf16.mxu0 0
      %876 = vmatpush1.bf16.msra.mxu0 %v860
      %877 = vmatprep.subr.bf16.mxu0 0
      %878 = vmatpush1.bf16.msra.mxu0 0
      %879 = vmatprep.subr.bf16.mxu0 0
      %880 = vmatpush1.bf16.msra.mxu0 0
      %881 = vmatprep.subr.bf16.mxu0 0
      %882 = vmatpush1.bf16.msra.mxu0 0
      %883 = vmatprep.subr.bf16.mxu0 0
      %884 = vmatpush1.bf16.msra.mxu0 0
      %885 = vmatprep.subr.bf16.mxu0 0
      %886 = vmatpush1.bf16.msra.mxu0 0
      %887 = vmatprep.subr.bf16.mxu0 0
      %888 = vmatpush1.bf16.msra.mxu0 0
      %889 = vmatprep.subr.bf16.mxu0 0
      %890 = vmatpush1.bf16.msra.mxu0 0
      %891 = vmatprep.subr.bf16.mxu0 0
      %892 = vmatpush1.bf16.msra.mxu0 0
      %893 = vmatprep.mubr.bf16.mxu0 0
      %894 = vmatmul.mubr.bf16.gmra.mrb[0].mxu0 %v852
      %v895 = vpop.f32.mrb[0].mxu0
      %v896 = vadd.f32 0.0, %v895
      %v897 = vpop.f32.mrb[0].mxu0
      %v898 = vpop.f32.mrb[0].mxu0
      %v899 = vpop.f32.mrb[0].mxu0
      %900 = vdwg.mxu0
      %901 = vst [vmem:[#allocation18] sm:$0x3] %v896
    $region81: #{gin_forward.1} parent=1 // pred_fallthru
      _
    // Predicated region
    $region82: #{gin_forward.1} parent=1 // pred_check
      _
    $region83: #{gin_forward.1} parent=1 // pred_check_branch
      %903 = sbr.rel (0) target = $region85
    $region84: #{gin_forward.1} parent=1 // pred_region
      %s905 = ssub.s32 32, 32
      %906 = vsyncadd [#allocation5], %s905
      %s908 = sshll.u32 [#allocation18], 4
      %s909 = int_to_ptr.vmem [resolvable:$true] %s908
      %911 = dma.vmem_to_hbm [thread:$0]  %s909, 32, %s9, [#allocation5]
    $region85: #{gin_forward.1} parent=1 // pred_fallthru
      _
    // Predicated region
    $region86: #{gin_forward.1} parent=1 // pred_check
      _
    $region87: #{gin_forward.1} parent=1 // pred_check_branch
      %913 = sbr.rel (0) target = $region89
    $region88: #{gin_forward.1} parent=1 // pred_region
      %914 = dma.done [#allocation5], 32
    $region89: #{gin_forward.1} parent=1 // pred_fallthru
      _
    %915 = vsyncpa [#allocation4], 1
    %916 = vsyncpa [#allocation7], 1
    %917 = vsyncpa [#allocation10], 1
    %918 = vsyncpa [#allocation13], 1
    %919 = vsyncpa [#allocation16], 1
    %920 = vsyncpa [#allocation5], 1

</llo_original>
